<compile_context>
chip_gen: v7x
topology: tpu7x:2x2x1
jax: 0.10.0
libtpu: 0.0.40
codegen_flags: <defaults>
</compile_context>

<pallas_src>
import functools

import jax
import jax.numpy as jnp
from jax.experimental import pallas as pl
from jax.experimental.pallas import tpu as pltpu

ATTN_KERNEL = 31          # attention_kernel_size
ATTN_FILTERS = 32         # attention_n_filters
PAD = (ATTN_KERNEL - 1) // 2
LANES = 128
SUBLANES = 8
KP = ((ATTN_KERNEL + SUBLANES - 1) // SUBLANES) * SUBLANES    # 32: taps padded per channel


def _round_up(x, m):
    return (x + m - 1) // m * m


# --------------------------------- kernel ---------------------------------------
def _laa_kernel(q_ref, state_ref, bias_ref, psrc_ref, src_ref,
                wqt_ref, wcombt_ref, vw_ref,
                ctx_ref, nstate_ref, *, kernel_size, block_b):
    pad = (kernel_size - 1) // 2
    kp = KP
    bb = block_b
    tp = state_ref.shape[-1]

    # ------------------------- whole-block work ---------------------------------
    q = q_ref[...][:, 0, :]                                   # (Bb, Dq)
    # processed_query for every row of the block at once: (A, Dq) x (Bb, Dq)^T.
    pq_all = jax.lax.dot_general(
        wqt_ref[...], q, dimension_numbers=(((1,), (1,)), ((), ())),
        preferred_element_type=jnp.float32)                   # (A, Bb)

    state = state_ref[...]                                    # (Bb, 2, Tp) f32
    aw_all = state[:, 0, :]                                   # previous attention weights
    cum_all = state[:, 1, :]                                  # previous cumulative weights
    bias_all = bias_ref[...]                                  # (Bb, 1, Tp): where(mask, vb, -inf)

    # Channel pre-rolls shared by every row.  Combined with the strided roll
    # below (row j rolled right by j), window row j = c*KP + r becomes
    # x_c[(t + k - pad) mod Tp] with conv tap k = K-1-r, i.e. the full im2col
    # matrix with no misaligned lane slices / sublane concats.  The circular
    # wrap is harmless because Tp >= T + pad: wrapped reads land in the
    # guaranteed-zero tail and wrapped garbage only on -inf-masked positions.
    y_aw = pltpu.roll(aw_all, tp - pad, 1)                    # (Bb, Tp)
    y_cum = pltpu.roll(cum_all, tp - pad - kp, 1)             # (Bb, Tp)

    vw = vw_ref[...]                                          # (A, 1)
    wcombt = wcombt_ref[...]                                  # (A, 2*KP) folded conv+dense

    for b in range(bb):                                       # Bb is small and static
        # ---- location features: broadcast + ONE strided roll + ONE MXU matmul --
        rep = jnp.concatenate(
            [jnp.broadcast_to(y_aw[b:b + 1], (kp, tp)),
             jnp.broadcast_to(y_cum[b:b + 1], (kp, tp))], axis=0)        # (2*KP, Tp)
        x_win = pltpu.roll(rep, 0, 1, stride=1, stride_axis=0)           # row j -> shift j
        ploc = jnp.dot(wcombt, x_win,
                       preferred_element_type=jnp.float32)               # (A, Tp)

        # ---- energies = v . tanh(pq + psrc + ploc) + bias (vb folded into bias)
        h = jnp.tanh(pq_all[:, b:b + 1] + psrc_ref[b].astype(jnp.float32) + ploc)
        energies = jnp.sum(h * vw, axis=0, keepdims=True) + bias_all[b]  # (1, Tp)

        # ---- masked softmax over time (lane axis); EUP reciprocal, no vector divide
        m = jnp.max(energies, axis=1, keepdims=True)
        e = jnp.exp(energies - m)
        s = jnp.sum(e, axis=1, keepdims=True)
        inv = pl.reciprocal(s, approx=True)
        inv = inv * (2.0 - s * inv)          # one Newton step -> ~f32-exact, still cheap
        align = e * inv                                                  # (1, Tp)

        # ---- attention context (lane-dense (1, Ep) MXU dot) and merged new state
        ctx = jnp.dot(align.astype(src_ref.dtype), src_ref[b],
                      preferred_element_type=jnp.float32)                # (1, Ep)
        ctx_ref[b] = ctx.astype(ctx_ref.dtype)
        nstate_ref[b] = jnp.concatenate(
            [align, cum_all[b:b + 1] + align], axis=0)                   # (2, Tp)


# --------------------------------- wrappers --------------------------------------
def make_params(wq, vw, vb, conv_w_oih, wloc):
    """Fold weights into kernel-friendly layouts (done once at model load).

    Column j = c*KP + r of wcombT multiplies the window value x_c[t + k - pad]
    with conv tap k = K-1-r (the order produced by the in-kernel strided roll);
    taps are zero-padded from K=31 to KP=32 per channel to stay sublane-aligned.
    """
    del vb  # vb is folded into the additive mask bias in prepare_attention_memory.
    n_filters, _, kernel_size = conv_w_oih.shape
    w_rows = jnp.transpose(jnp.flip(conv_w_oih, axis=2), (1, 2, 0))      # (2, K, F)
    w_rows = jnp.pad(w_rows, ((0, 0), (0, KP - kernel_size), (0, 0)))    # (2, KP, F)
    wcomb = w_rows.reshape(2 * KP, n_filters) @ wloc                     # (2*KP, A)
    return {
        "wqT": jnp.asarray(wq).T,        # (A, Dq)
        "wcombT": wcomb.T,               # (A, 2*KP) folded conv + location dense
        "vw": jnp.asarray(vw),           # (A, 1)
    }


def prepare_attention_memory(source, processed_source, source_mask, vb,
                             compute_dtype=jnp.float32):
    """Once per utterance (constant across decoder steps).

    * T -> Tp = round_up(T + PAD, 128): keeps the circular wrap of the in-kernel
      rolls inside the guaranteed-zero tail.
    * E -> Ep = round_up(E, 128): lane-dense context matmul / output store.
    * The boolean mask and the v-bias are folded into one additive bias.
    * compute_dtype=jnp.bfloat16 halves the per-step HBM re-read of psrc/source
      on v6e/v7x (f32 accumulation is kept inside the kernel).
    """
    B, T, E = source.shape
    Tp = _round_up(T + PAD, LANES)
    Ep = _round_up(E, LANES)
    src = jnp.pad(source, ((0, 0), (0, Tp - T), (0, Ep - E))).astype(compute_dtype)
    psrc_t = jnp.pad(jnp.transpose(processed_source, (0, 2, 1)),
                     ((0, 0), (0, 0), (0, Tp - T))).astype(compute_dtype)
    mask_p = jnp.pad(source_mask, ((0, 0), (0, Tp - T)))
    vb_s = jnp.asarray(vb, jnp.float32).reshape(())
    bias = jnp.where(mask_p, vb_s, -jnp.inf).astype(jnp.float32)[:, None, :]
    return src, psrc_t, bias


def init_state(batch, Tp):
    """Matches init_states(): zero attention_weights / attention_weights_cum."""
    return jnp.zeros((batch, 2, Tp), jnp.float32)


def pack_state(attention_weights, attention_weights_cum, Tp):
    """One-time merge + pad of an existing (B, T) state pair into (B, 2, Tp)."""
    T = attention_weights.shape[1]
    st = jnp.stack([attention_weights, attention_weights_cum], axis=1)
    return jnp.pad(st, ((0, 0), (0, 0), (0, Tp - T))).astype(jnp.float32)


def _pick_block_b(B, Tp, Ep, A, Dq, in_itemsize, max_block_b=8,
                  vmem_budget=16 * 1024 * 1024):
    """Largest divisor of B (<= max_block_b) whose double-buffered block fits the
    VMEM budget -- shrink the batch block rather than raise the VMEM cap (v7x)."""
    def footprint(bb):
        per_row = (Dq * 4 + 3 * Tp * 4 + 2 * Tp * 4 + Ep * 4
                   + (A * Tp + Tp * Ep) * in_itemsize)
        return 2 * bb * per_row
    best = 1
    for cand in range(2, min(B, max_block_b) + 1):
        if B % cand == 0 and footprint(cand) <= vmem_budget:
            best = cand
    return best


def location_aware_attention(query, src, psrc_t, bias, state, params,
                             *, max_block_b=8):
    """One decoder step.

    query : (B, Dq)      attention-RNN hidden state
    src   : (B, Tp, Ep)  padded encoder outputs (from prepare_attention_memory)
    psrc_t: (B, A, Tp)   padded processed_source, feature-major
    bias  : (B, 1, Tp)   additive vb / -inf mask bias
    state : (B, 2, Tp)   merged [attention_weights, attention_weights_cum]
    Returns (attention_context (B, Ep) f32, new state (B, 2, Tp) f32).
    """
    B, Tp, Ep = src.shape
    A = psrc_t.shape[1]
    Dq = query.shape[1]
    K2 = params["wcombT"].shape[1]

    Bb = _pick_block_b(B, Tp, Ep, A, Dq, src.dtype.itemsize, max_block_b)
    grid = (B // Bb,)

    q3 = query.astype(jnp.float32).reshape(B, 1, Dq)
    blk = lambda i: (i, 0, 0)
    whole = lambda i: (0, 0)

    kernel = functools.partial(_laa_kernel, kernel_size=ATTN_KERNEL, block_b=Bb)
    ctx3, new_state = pl.pallas_call(
        kernel,
        out_shape=(
            jax.ShapeDtypeStruct((B, 1, Ep), jnp.float32),   # attention_context
            jax.ShapeDtypeStruct((B, 2, Tp), jnp.float32),   # [alignment, new cum]
        ),
        grid=grid,
        in_specs=[
            pl.BlockSpec((Bb, 1, Dq), blk),      # query
            pl.BlockSpec((Bb, 2, Tp), blk),      # merged recurrent state
            pl.BlockSpec((Bb, 1, Tp), blk),      # mask / v-bias
            pl.BlockSpec((Bb, A, Tp), blk),      # processed_source (feature-major)
            pl.BlockSpec((Bb, Tp, Ep), blk),     # source (lane-dense Ep)
            pl.BlockSpec((A, Dq), whole),        # query weight (transposed)
            pl.BlockSpec((A, K2), whole),        # folded conv + location-dense weight
            pl.BlockSpec((A, 1), whole),         # v weight
        ],
        out_specs=(
            pl.BlockSpec((Bb, 1, Ep), blk),
            pl.BlockSpec((Bb, 2, Tp), blk),
        ),
        compiler_params=pltpu.CompilerParams(
            dimension_semantics=("parallel",),
            vmem_limit_bytes=32 * 1024 * 1024,
        ),
    )(q3, state, bias, psrc_t, src,
      params["wqT"], params["wcombT"], params["vw"])
    return ctx3.reshape(B, Ep), new_state


# ----------------------- pure-JAX reference (for checking) -----------------------
def reference(query, source, processed_source, source_mask,
              attention_weights, attention_weights_cum,
              wq, conv_w_oih, wloc, vw, vb):
    cat = jnp.stack([attention_weights, attention_weights_cum], axis=1)   # (B, 2, T)
    conv = jax.lax.conv_general_dilated(
        cat, conv_w_oih, window_strides=(1,), padding=[(PAD, PAD)],
        dimension_numbers=("NCH", "OIH", "NCH"))                          # (B, F, T)
    ploc = jnp.einsum("bft,fa->bta", conv, wloc)
    pq = query @ wq
    h = jnp.tanh(pq[:, None, :] + processed_source + ploc)
    en = jnp.einsum("bta,ao->bt", h, vw) + vb[0, 0]
    en = jnp.where(source_mask, en, -jnp.inf)
    al = jax.nn.softmax(en, axis=-1)
    ctx = jnp.einsum("bt,bte->be", al, source)
    return ctx, al, attention_weights_cum + al


def _xavier(key, shape, fan_in, fan_out, gain=1.0):
    lim = gain * (6.0 / (fan_in + fan_out)) ** 0.5
    return jax.random.uniform(key, shape, jnp.float32, -lim, lim)


if __name__ == "__main__":
    # Small shapes consistent with the module.
    B, T = 2, 16
    attn_rnn_dim, attn_dim, encoder_dim = 16, 32, 24
    tanh_gain = 5.0 / 3.0

    key = jax.random.PRNGKey(0)
    ks = jax.random.split(key, 12)

    wq = _xavier(ks[0], (attn_rnn_dim, attn_dim), attn_rnn_dim, attn_dim, tanh_gain)
    ws = _xavier(ks[1], (encoder_dim, attn_dim), encoder_dim, attn_dim, tanh_gain)
    vw = _xavier(ks[2], (attn_dim, 1), attn_dim, 1, 1.0)
    vb = jax.random.uniform(ks[3], (1, 1), jnp.float32,
                            -1.0 / attn_dim ** 0.5, 1.0 / attn_dim ** 0.5)
    conv_w_oih = _xavier(ks[4], (ATTN_FILTERS, 2, ATTN_KERNEL),
                         2 * ATTN_KERNEL, ATTN_FILTERS, 1.0)       # PyTorch (O, I, K)
    wloc = _xavier(ks[5], (ATTN_FILTERS, attn_dim), ATTN_FILTERS, attn_dim, tanh_gain)

    params = make_params(wq, vw, vb, conv_w_oih, wloc)

    # Inputs.
    query = jax.random.normal(ks[6], (B, attn_rnn_dim), jnp.float32)
    source = jax.random.normal(ks[7], (B, T, encoder_dim), jnp.float32)
    processed_source = source @ ws                      # preprocess_source_inputs (glue)
    lengths = jnp.array([T, 12])
    source_mask = jnp.arange(T)[None, :] < lengths[:, None]
    attention_weights = jax.nn.softmax(
        jax.random.normal(ks[8], (B, T), jnp.float32), axis=-1)
    attention_weights_cum = attention_weights * 3.0 + 0.1

    ctx_r, align_r, cum_r = reference(
        query, source, processed_source, source_mask,
        attention_weights, attention_weights_cum,
        wq, conv_w_oih, wloc, vw, vb)

    def run(compute_dtype):
        src_p, psrc_t, bias = prepare_attention_memory(
            source, processed_source, source_mask, vb, compute_dtype)
        Tp = src_p.shape[1]
        state = pack_state(attention_weights, attention_weights_cum, Tp)
        ctx_p, new_state = location_aware_attention(
            query, src_p, psrc_t, bias, state, params)
        jax.block_until_ready((ctx_p, new_state))
        return ctx_p[:, :encoder_dim], new_state

    # f32 storage path (default).
    ctx, new_state = run(jnp.float32)
    align = new_state[:, 0, :T]
    cum_new = new_state[:, 1, :T]
    assert jnp.allclose(ctx, ctx_r, atol=2e-4, rtol=2e-4), "context mismatch"
    assert jnp.allclose(align, align_r, atol=2e-5, rtol=2e-4), "alignment mismatch"
    assert jnp.allclose(cum_new, cum_r, atol=2e-5, rtol=2e-4), "cum mismatch"
    # The padded tail of the recurrent state must stay exactly zero (this keeps
    # the circular-roll im2col exact across decoder steps).
    assert jnp.all(new_state[:, :, T:] == 0.0), "padded state tail not zero"

    # bf16-storage path (recommended on v6e/v7x): smoke test, loose tolerances.
    ctx_h, new_state_h = run(jnp.bfloat16)
    assert jnp.allclose(ctx_h, ctx_r, atol=5e-2, rtol=5e-2), "bf16 context mismatch"
    assert jnp.allclose(new_state_h[:, 0, :T], align_r, atol=5e-2), "bf16 alignment mismatch"

    # TODO(synk): rows whose mask is entirely False produce NaN alignments (softmax
    # of all -inf), matching PyTorch's behaviour; guard upstream if that can occur.
    print("KERNEL_OK")
</pallas_src>

<mosaic_0001>
module attributes {stable_mosaic.version = 11 : i64} {
  func.func @_laa_kernel(%arg0: i32, %arg1: memref<2x1x16xf32, #tpu.memory_space<vmem>>, %arg2: memref<2x2x128xf32, #tpu.memory_space<vmem>>, %arg3: memref<2x1x128xf32, #tpu.memory_space<vmem>>, %arg4: memref<2x32x128xf32, #tpu.memory_space<vmem>>, %arg5: memref<2x128x128xf32, #tpu.memory_space<vmem>>, %arg6: memref<32x16xf32, #tpu.memory_space<vmem>>, %arg7: memref<32x64xf32, #tpu.memory_space<vmem>>, %arg8: memref<32x1xf32, #tpu.memory_space<vmem>>, %arg9: memref<2x1x128xf32, #tpu.memory_space<vmem>>, %arg10: memref<2x2x128xf32, #tpu.memory_space<vmem>>) attributes {dimension_semantics = [#tpu.dimension_semantics<parallel>], iteration_bounds = array<i64: 1>, scalar_prefetch = 0 : i64, scratch_operands = 0 : i64, tpu.core_type = #tpu.core_type<tc>, window_params = [{transform_indices = @transform_0, window_bounds = array<i64: 2, 1, 16>}, {transform_indices = @transform_1, window_bounds = array<i64: 2, 2, 128>}, {transform_indices = @transform_2, window_bounds = array<i64: 2, 1, 128>}, {transform_indices = @transform_3, window_bounds = array<i64: 2, 32, 128>}, {transform_indices = @transform_4, window_bounds = array<i64: 2, 128, 128>}, {pipeline_mode = #tpu.pipeline_mode<synchronous>, transform_indices = @transform_5, window_bounds = array<i64: 32, 16>}, {pipeline_mode = #tpu.pipeline_mode<synchronous>, transform_indices = @transform_6, window_bounds = array<i64: 32, 64>}, {pipeline_mode = #tpu.pipeline_mode<synchronous>, transform_indices = @transform_7, window_bounds = array<i64: 32, 1>}, {transform_indices = @transform_8, window_bounds = array<i64: 2, 1, 128>}, {transform_indices = @transform_9, window_bounds = array<i64: 2, 2, 128>}]} {
    %c0 = arith.constant 0 : index
    %c0_0 = arith.constant 0 : index
    %c0_1 = arith.constant 0 : index
    %0 = vector.load %arg1[%c0, %c0_0, %c0_1] : memref<2x1x16xf32, #tpu.memory_space<vmem>>, vector<2x1x16xf32>
    %1 = vector.shape_cast %0 : vector<2x1x16xf32> to vector<2x16xf32>
    %c0_2 = arith.constant 0 : index
    %c0_3 = arith.constant 0 : index
    %2 = vector.load %arg6[%c0_2, %c0_3] : memref<32x16xf32, #tpu.memory_space<vmem>>, vector<32x16xf32>
    %cst = arith.constant dense<0.000000e+00> : vector<32x2xf32>
    %3 = tpu.matmul %2, %1, %cst {dimension_numbers = #tpu.dot_dimension_numbers<[1], [1], [0], [0], [0, 0, 1, 0], [], []>} : vector<32x16xf32>, vector<2x16xf32>, vector<32x2xf32> -> vector<32x2xf32>
    %c0_4 = arith.constant 0 : index
    %c0_5 = arith.constant 0 : index
    %c0_6 = arith.constant 0 : index
    %4 = vector.load %arg2[%c0_4, %c0_5, %c0_6] : memref<2x2x128xf32, #tpu.memory_space<vmem>>, vector<2x2x128xf32>
    %5 = vector.extract_strided_slice %4 {offsets = [0, 0, 0], sizes = [2, 1, 128], strides = [1, 1, 1]} : vector<2x2x128xf32> to vector<2x1x128xf32>
    %6 = vector.shape_cast %5 : vector<2x1x128xf32> to vector<2x128xf32>
    %7 = vector.extract_strided_slice %4 {offsets = [0, 1, 0], sizes = [2, 1, 128], strides = [1, 1, 1]} : vector<2x2x128xf32> to vector<2x1x128xf32>
    %8 = vector.shape_cast %7 : vector<2x1x128xf32> to vector<2x128xf32>
    %c0_7 = arith.constant 0 : index
    %c0_8 = arith.constant 0 : index
    %c0_9 = arith.constant 0 : index
    %9 = vector.load %arg3[%c0_7, %c0_8, %c0_9] : memref<2x1x128xf32, #tpu.memory_space<vmem>>, vector<2x1x128xf32>
    %c113_i32 = arith.constant 113 : i32
    %10 = tpu.dynamic_rotate %6 by %c113_i32 dim 1 : vector<2x128xf32>, i32 -> vector<2x128xf32>
    %c81_i32 = arith.constant 81 : i32
    %11 = tpu.dynamic_rotate %8 by %c81_i32 dim 1 : vector<2x128xf32>, i32 -> vector<2x128xf32>
    %c0_10 = arith.constant 0 : index
    %c0_11 = arith.constant 0 : index
    %12 = vector.load %arg8[%c0_10, %c0_11] : memref<32x1xf32, #tpu.memory_space<vmem>>, vector<32x1xf32>
    %c0_12 = arith.constant 0 : index
    %c0_13 = arith.constant 0 : index
    %13 = vector.load %arg7[%c0_12, %c0_13] : memref<32x64xf32, #tpu.memory_space<vmem>>, vector<32x64xf32>
    %14 = vector.extract_strided_slice %10 {offsets = [0, 0], sizes = [1, 128], strides = [1, 1]} : vector<2x128xf32> to vector<1x128xf32>
    %15 = vector.shape_cast %14 : vector<1x128xf32> to vector<1x128xf32>
    %16 = vector.broadcast %15 : vector<1x128xf32> to vector<32x128xf32>
    %17 = vector.extract_strided_slice %11 {offsets = [0, 0], sizes = [1, 128], strides = [1, 1]} : vector<2x128xf32> to vector<1x128xf32>
    %18 = vector.shape_cast %17 : vector<1x128xf32> to vector<1x128xf32>
    %19 = vector.broadcast %18 : vector<1x128xf32> to vector<32x128xf32>
    %20 = tpu.concatenate %16, %19 in 0 : vector<32x128xf32>, vector<32x128xf32> -> vector<64x128xf32>
    %c0_i32 = arith.constant 0 : i32
    %21 = tpu.dynamic_rotate %20 by %c0_i32 dim 1 {stride = 1 : si32, stride_dimension = 0 : si32} : vector<64x128xf32>, i32 -> vector<64x128xf32>
    %cst_14 = arith.constant dense<0.000000e+00> : vector<32x128xf32>
    %22 = tpu.matmul %13, %21, %cst_14 {dimension_numbers = #tpu.dot_dimension_numbers<[1], [0], [0], [1], [0, 0, 1, 1], [], []>} : vector<32x64xf32>, vector<64x128xf32>, vector<32x128xf32> -> vector<32x128xf32>
    %23 = vector.extract_strided_slice %3 {offsets = [0, 0], sizes = [32, 1], strides = [1, 1]} : vector<32x2xf32> to vector<32x1xf32>
    %c0_15 = arith.constant 0 : index
    %c0_16 = arith.constant 0 : index
    %c0_17 = arith.constant 0 : index
    %24 = vector.load %arg4[%c0_15, %c0_16, %c0_17] : memref<2x32x128xf32, #tpu.memory_space<vmem>>, vector<1x32x128xf32>
    %25 = vector.shape_cast %24 : vector<1x32x128xf32> to vector<32x128xf32>
    %26 = vector.broadcast %23 : vector<32x1xf32> to vector<32x128xf32>
    %27 = arith.addf %26, %25 : vector<32x128xf32>
    %28 = arith.addf %27, %22 : vector<32x128xf32>
    %29 = math.tanh %28 : vector<32x128xf32>
    %30 = vector.broadcast %12 : vector<32x1xf32> to vector<32x128xf32>
    %31 = arith.mulf %29, %30 : vector<32x128xf32>
    %cst_18 = arith.constant dense<0.000000e+00> : vector<128xf32>
    %32 = vector.multi_reduction <add>, %31, %cst_18 [0] : vector<32x128xf32> to vector<128xf32>
    %33 = vector.shape_cast %32 : vector<128xf32> to vector<1x128xf32>
    %34 = vector.extract_strided_slice %9 {offsets = [0, 0, 0], sizes = [1, 1, 128], strides = [1, 1, 1]} : vector<2x1x128xf32> to vector<1x1x128xf32>
    %35 = vector.shape_cast %34 : vector<1x1x128xf32> to vector<1x128xf32>
    %36 = arith.addf %33, %35 : vector<1x128xf32>
    %cst_19 = arith.constant dense<0xFF800000> : vector<1xf32>
    %37 = vector.multi_reduction <maximumf>, %36, %cst_19 [1] : vector<1x128xf32> to vector<1xf32>
    %38 = vector.shape_cast %37 : vector<1xf32> to vector<1x1xf32>
    %39 = vector.broadcast %38 : vector<1x1xf32> to vector<1x128xf32>
    %40 = arith.subf %36, %39 : vector<1x128xf32>
    %41 = math.exp %40 : vector<1x128xf32>
    %cst_20 = arith.constant dense<0.000000e+00> : vector<1xf32>
    %42 = vector.multi_reduction <add>, %41, %cst_20 [1] : vector<1x128xf32> to vector<1xf32>
    %43 = vector.shape_cast %42 : vector<1xf32> to vector<1x1xf32>
    %44 = tpu.reciprocal %43 {approx = true} : vector<1x1xf32> -> vector<1x1xf32>
    %45 = arith.mulf %43, %44 : vector<1x1xf32>
    %cst_21 = arith.constant 2.000000e+00 : f32
    %46 = vector.broadcast %cst_21 : f32 to vector<1x1xf32>
    %47 = arith.subf %46, %45 : vector<1x1xf32>
    %48 = arith.mulf %44, %47 : vector<1x1xf32>
    %49 = vector.broadcast %48 : vector<1x1xf32> to vector<1x128xf32>
    %50 = arith.mulf %41, %49 : vector<1x128xf32>
    %c0_22 = arith.constant 0 : index
    %c0_23 = arith.constant 0 : index
    %c0_24 = arith.constant 0 : index
    %51 = vector.load %arg5[%c0_22, %c0_23, %c0_24] : memref<2x128x128xf32, #tpu.memory_space<vmem>>, vector<1x128x128xf32>
    %52 = vector.shape_cast %51 : vector<1x128x128xf32> to vector<128x128xf32>
    %cst_25 = arith.constant dense<0.000000e+00> : vector<1x128xf32>
    %53 = tpu.matmul %50, %52, %cst_25 {dimension_numbers = #tpu.dot_dimension_numbers<[1], [0], [0], [1], [0, 0, 1, 1], [], []>} : vector<1x128xf32>, vector<128x128xf32>, vector<1x128xf32> -> vector<1x128xf32>
    %c0_26 = arith.constant 0 : index
    %c0_27 = arith.constant 0 : index
    %c0_28 = arith.constant 0 : index
    %54 = vector.load %arg9[%c0_26, %c0_27, %c0_28] : memref<2x1x128xf32, #tpu.memory_space<vmem>>, vector<1x1x128xf32>
    %55 = vector.shape_cast %54 : vector<1x1x128xf32> to vector<1x128xf32>
    %56 = vector.shape_cast %53 : vector<1x128xf32> to vector<1x1x128xf32>
    tpu.vector_store %arg9[%c0_26, %c0_27, %c0_28], %56 {strides = array<i32>} : memref<2x1x128xf32, #tpu.memory_space<vmem>>, vector<1x1x128xf32>,
    %57 = vector.extract_strided_slice %8 {offsets = [0, 0], sizes = [1, 128], strides = [1, 1]} : vector<2x128xf32> to vector<1x128xf32>
    %58 = arith.addf %57, %50 : vector<1x128xf32>
    %59 = tpu.concatenate %50, %58 in 0 : vector<1x128xf32>, vector<1x128xf32> -> vector<2x128xf32>
    %c0_29 = arith.constant 0 : index
    %c0_30 = arith.constant 0 : index
    %c0_31 = arith.constant 0 : index
    %60 = vector.load %arg10[%c0_29, %c0_30, %c0_31] : memref<2x2x128xf32, #tpu.memory_space<vmem>>, vector<1x2x128xf32>
    %61 = vector.shape_cast %60 : vector<1x2x128xf32> to vector<2x128xf32>
    %62 = vector.shape_cast %59 : vector<2x128xf32> to vector<1x2x128xf32>
    tpu.vector_store %arg10[%c0_29, %c0_30, %c0_31], %62 {strides = array<i32>} : memref<2x2x128xf32, #tpu.memory_space<vmem>>, vector<1x2x128xf32>,
    %63 = vector.extract_strided_slice %10 {offsets = [1, 0], sizes = [1, 128], strides = [1, 1]} : vector<2x128xf32> to vector<1x128xf32>
    %64 = vector.shape_cast %63 : vector<1x128xf32> to vector<1x128xf32>
    %65 = vector.broadcast %64 : vector<1x128xf32> to vector<32x128xf32>
    %66 = vector.extract_strided_slice %11 {offsets = [1, 0], sizes = [1, 128], strides = [1, 1]} : vector<2x128xf32> to vector<1x128xf32>
    %67 = vector.shape_cast %66 : vector<1x128xf32> to vector<1x128xf32>
    %68 = vector.broadcast %67 : vector<1x128xf32> to vector<32x128xf32>
    %69 = tpu.concatenate %65, %68 in 0 : vector<32x128xf32>, vector<32x128xf32> -> vector<64x128xf32>
    %c0_i32_32 = arith.constant 0 : i32
    %70 = tpu.dynamic_rotate %69 by %c0_i32_32 dim 1 {stride = 1 : si32, stride_dimension = 0 : si32} : vector<64x128xf32>, i32 -> vector<64x128xf32>
    %cst_33 = arith.constant dense<0.000000e+00> : vector<32x128xf32>
    %71 = tpu.matmul %13, %70, %cst_33 {dimension_numbers = #tpu.dot_dimension_numbers<[1], [0], [0], [1], [0, 0, 1, 1], [], []>} : vector<32x64xf32>, vector<64x128xf32>, vector<32x128xf32> -> vector<32x128xf32>
    %72 = vector.extract_strided_slice %3 {offsets = [0, 1], sizes = [32, 1], strides = [1, 1]} : vector<32x2xf32> to vector<32x1xf32>
    %c1 = arith.constant 1 : index
    %c0_34 = arith.constant 0 : index
    %c0_35 = arith.constant 0 : index
    %73 = vector.load %arg4[%c1, %c0_34, %c0_35] : memref<2x32x128xf32, #tpu.memory_space<vmem>>, vector<1x32x128xf32>
    %74 = vector.shape_cast %73 : vector<1x32x128xf32> to vector<32x128xf32>
    %75 = vector.broadcast %72 : vector<32x1xf32> to vector<32x128xf32>
    %76 = arith.addf %75, %74 : vector<32x128xf32>
    %77 = arith.addf %76, %71 : vector<32x128xf32>
    %78 = math.tanh %77 : vector<32x128xf32>
    %79 = vector.broadcast %12 : vector<32x1xf32> to vector<32x128xf32>
    %80 = arith.mulf %78, %79 : vector<32x128xf32>
    %cst_36 = arith.constant dense<0.000000e+00> : vector<128xf32>
    %81 = vector.multi_reduction <add>, %80, %cst_36 [0] : vector<32x128xf32> to vector<128xf32>
    %82 = vector.shape_cast %81 : vector<128xf32> to vector<1x128xf32>
    %83 = vector.extract_strided_slice %9 {offsets = [1, 0, 0], sizes = [1, 1, 128], strides = [1, 1, 1]} : vector<2x1x128xf32> to vector<1x1x128xf32>
    %84 = vector.shape_cast %83 : vector<1x1x128xf32> to vector<1x128xf32>
    %85 = arith.addf %82, %84 : vector<1x128xf32>
    %cst_37 = arith.constant dense<0xFF800000> : vector<1xf32>
    %86 = vector.multi_reduction <maximumf>, %85, %cst_37 [1] : vector<1x128xf32> to vector<1xf32>
    %87 = vector.shape_cast %86 : vector<1xf32> to vector<1x1xf32>
    %88 = vector.broadcast %87 : vector<1x1xf32> to vector<1x128xf32>
    %89 = arith.subf %85, %88 : vector<1x128xf32>
    %90 = math.exp %89 : vector<1x128xf32>
    %cst_38 = arith.constant dense<0.000000e+00> : vector<1xf32>
    %91 = vector.multi_reduction <add>, %90, %cst_38 [1] : vector<1x128xf32> to vector<1xf32>
    %92 = vector.shape_cast %91 : vector<1xf32> to vector<1x1xf32>
    %93 = tpu.reciprocal %92 {approx = true} : vector<1x1xf32> -> vector<1x1xf32>
    %94 = arith.mulf %92, %93 : vector<1x1xf32>
    %cst_39 = arith.constant 2.000000e+00 : f32
    %95 = vector.broadcast %cst_39 : f32 to vector<1x1xf32>
    %96 = arith.subf %95, %94 : vector<1x1xf32>
    %97 = arith.mulf %93, %96 : vector<1x1xf32>
    %98 = vector.broadcast %97 : vector<1x1xf32> to vector<1x128xf32>
    %99 = arith.mulf %90, %98 : vector<1x128xf32>
    %c1_40 = arith.constant 1 : index
    %c0_41 = arith.constant 0 : index
    %c0_42 = arith.constant 0 : index
    %100 = vector.load %arg5[%c1_40, %c0_41, %c0_42] : memref<2x128x128xf32, #tpu.memory_space<vmem>>, vector<1x128x128xf32>
    %101 = vector.shape_cast %100 : vector<1x128x128xf32> to vector<128x128xf32>
    %cst_43 = arith.constant dense<0.000000e+00> : vector<1x128xf32>
    %102 = tpu.matmul %99, %101, %cst_43 {dimension_numbers = #tpu.dot_dimension_numbers<[1], [0], [0], [1], [0, 0, 1, 1], [], []>} : vector<1x128xf32>, vector<128x128xf32>, vector<1x128xf32> -> vector<1x128xf32>
    %c1_44 = arith.constant 1 : index
    %c0_45 = arith.constant 0 : index
    %c0_46 = arith.constant 0 : index
    %103 = vector.load %arg9[%c1_44, %c0_45, %c0_46] : memref<2x1x128xf32, #tpu.memory_space<vmem>>, vector<1x1x128xf32>
    %104 = vector.shape_cast %103 : vector<1x1x128xf32> to vector<1x128xf32>
    %105 = vector.shape_cast %102 : vector<1x128xf32> to vector<1x1x128xf32>
    tpu.vector_store %arg9[%c1_44, %c0_45, %c0_46], %105 {strides = array<i32>} : memref<2x1x128xf32, #tpu.memory_space<vmem>>, vector<1x1x128xf32>,
    %106 = vector.extract_strided_slice %8 {offsets = [1, 0], sizes = [1, 128], strides = [1, 1]} : vector<2x128xf32> to vector<1x128xf32>
    %107 = arith.addf %106, %99 : vector<1x128xf32>
    %108 = tpu.concatenate %99, %107 in 0 : vector<1x128xf32>, vector<1x128xf32> -> vector<2x128xf32>
    %c1_47 = arith.constant 1 : index
    %c0_48 = arith.constant 0 : index
    %c0_49 = arith.constant 0 : index
    %109 = vector.load %arg10[%c1_47, %c0_48, %c0_49] : memref<2x2x128xf32, #tpu.memory_space<vmem>>, vector<1x2x128xf32>
    %110 = vector.shape_cast %109 : vector<1x2x128xf32> to vector<2x128xf32>
    %111 = vector.shape_cast %108 : vector<2x128xf32> to vector<1x2x128xf32>
    tpu.vector_store %arg10[%c1_47, %c0_48, %c0_49], %111 {strides = array<i32>} : memref<2x2x128xf32, #tpu.memory_space<vmem>>, vector<1x2x128xf32>,
    return
  }
  func.func @transform_0(%arg0: i32) -> (i32, i32, i32) {
    %c0_i32 = arith.constant 0 : i32
    %c0_i32_0 = arith.constant 0 : i32
    %c0_i32_1 = arith.constant 0 : i32
    return %arg0, %c0_i32, %c0_i32_0 : i32, i32, i32
  }
  func.func @transform_1(%arg0: i32) -> (i32, i32, i32) {
    %c0_i32 = arith.constant 0 : i32
    %c0_i32_0 = arith.constant 0 : i32
    %c0_i32_1 = arith.constant 0 : i32
    return %arg0, %c0_i32, %c0_i32_0 : i32, i32, i32
  }
  func.func @transform_2(%arg0: i32) -> (i32, i32, i32) {
    %c0_i32 = arith.constant 0 : i32
    %c0_i32_0 = arith.constant 0 : i32
    %c0_i32_1 = arith.constant 0 : i32
    return %arg0, %c0_i32, %c0_i32_0 : i32, i32, i32
  }
  func.func @transform_3(%arg0: i32) -> (i32, i32, i32) {
    %c0_i32 = arith.constant 0 : i32
    %c0_i32_0 = arith.constant 0 : i32
    %c0_i32_1 = arith.constant 0 : i32
    return %arg0, %c0_i32, %c0_i32_0 : i32, i32, i32
  }
  func.func @transform_4(%arg0: i32) -> (i32, i32, i32) {
    %c0_i32 = arith.constant 0 : i32
    %c0_i32_0 = arith.constant 0 : i32
    %c0_i32_1 = arith.constant 0 : i32
    return %arg0, %c0_i32, %c0_i32_0 : i32, i32, i32
  }
  func.func @transform_5(%arg0: i32) -> (i32, i32) {
    %c0_i32 = arith.constant 0 : i32
    %c0_i32_0 = arith.constant 0 : i32
    %c0_i32_1 = arith.constant 0 : i32
    return %c0_i32, %c0_i32_0 : i32, i32
  }
  func.func @transform_6(%arg0: i32) -> (i32, i32) {
    %c0_i32 = arith.constant 0 : i32
    %c0_i32_0 = arith.constant 0 : i32
    %c0_i32_1 = arith.constant 0 : i32
    return %c0_i32, %c0_i32_0 : i32, i32
  }
  func.func @transform_7(%arg0: i32) -> (i32, i32) {
    %c0_i32 = arith.constant 0 : i32
    %c0_i32_0 = arith.constant 0 : i32
    %c0_i32_1 = arith.constant 0 : i32
    return %c0_i32, %c0_i32_0 : i32, i32
  }
  func.func @transform_8(%arg0: i32) -> (i32, i32, i32) {
    %c0_i32 = arith.constant 0 : i32
    %c0_i32_0 = arith.constant 0 : i32
    %c0_i32_1 = arith.constant 0 : i32
    return %arg0, %c0_i32, %c0_i32_0 : i32, i32, i32
  }
  func.func @transform_9(%arg0: i32) -> (i32, i32, i32) {
    %c0_i32 = arith.constant 0 : i32
    %c0_i32_0 = arith.constant 0 : i32
    %c0_i32_1 = arith.constant 0 : i32
    return %arg0, %c0_i32, %c0_i32_0 : i32, i32, i32
  }
}

</mosaic_0001>

<llo_original>
// kernel: tpu_custom_call.1
$region0: #{tpu_custom_call.1}
  #allocation0 [shape = 'u32[]', space=smem, size = 0x4, offset = 0x4, fixed_abs, tag = 'smem constant byte address 0x4 - core index']
  #allocation1 [shape = 'u32[144,128]{1,0:T(1,128)}', space=vmem, size = 0x12000, scoped, tag = 'internal scratch']
  %s0 = inlined_call_operand.hbm [shape: f32[2,1,16], index: 0, kind: input, shape index: {}]
  %s1 = inlined_call_operand.hbm [shape: f32[2,2,128], index: 1, kind: input, shape index: {}]
  %s2 = inlined_call_operand.hbm [shape: f32[2,1,128], index: 2, kind: input, shape index: {}]
  %s3 = inlined_call_operand.vmem [shape: f32[2,32,128], index: 3, kind: input, shape index: {}]
  %s4 = inlined_call_operand.hbm [shape: f32[2,128,128], index: 4, kind: input, shape index: {}]
  %s5 = inlined_call_operand.vmem [shape: f32[32,16], index: 5, kind: input, shape index: {}]
  %s6 = inlined_call_operand.vmem [shape: f32[32,64], index: 6, kind: input, shape index: {}]
  %s7 = inlined_call_operand.vmem [shape: f32[32,1], index: 7, kind: input, shape index: {}]
  %s8 = inlined_call_operand.hbm [shape: f32[2,1,128], index: 8, kind: output, shape index: {0}]
  %s9 = inlined_call_operand.hbm [shape: f32[2,2,128], index: 9, kind: output, shape index: {1}]
  %10 = xla_tuple %s8, %s9
  %s11 = sld [smem:[#allocation0]]
  $region66: #{tpu_custom_call.1} parent=0
    _
  %s13 = ssub.s32 1, %s11
  %s14 = scalar_select 0, %s13, %s11
  $region1: #{tpu_custom_call.1} parent=0
    #allocation2 [shape = 'u8[1024]{0}', space=vmem, size = 0x400, scoped, tag = 'input window, operand 0, single buffered']
    #allocation3 [shape = 's32[1]{0}', space=sflag, size = 0x4, scoped, tag = 'scoped memory for tpu_custom_call.1']
    #allocation4 [shape = 's32[1]{0}', space=sflag, size = 0x4, scoped, tag = 'scoped memory for tpu_custom_call.1']
    #allocation5 [shape = 'u8[2048]{0}', space=vmem, size = 0x800, scoped, tag = 'input window, operand 1, single buffered']
    #allocation6 [shape = 's32[1]{0}', space=sflag, size = 0x4, scoped, tag = 'scoped memory for tpu_custom_call.1']
    #allocation7 [shape = 'u8[1024]{0}', space=vmem, size = 0x400, scoped, tag = 'input window, operand 2, single buffered']
    #allocation8 [shape = 'u8[131072]{0}', space=vmem, size = 0x20000, scoped, tag = 'input window, operand 4, single buffered']
    #allocation9 [shape = 's32[1]{0}', space=sflag, size = 0x4, scoped, tag = 'scoped memory for tpu_custom_call.1']
    #allocation10 [shape = 'u8[1024]{0}', space=vmem, size = 0x400, scoped, tag = 'output window, operand 0, single buffered']
    #allocation11 [shape = 'u8[2048]{0}', space=vmem, size = 0x800, scoped, tag = 'output window, operand 1, single buffered']
    #allocation12 [shape = 's32[1]{0}', space=sflag, size = 0x4, scoped, tag = 'scoped memory for tpu_custom_call.1']
    %15 = vsyncpa [#allocation3], 0
    %16 = vsyncpa [#allocation6], 0
    %17 = vsyncpa [#allocation9], 0
    %18 = vsyncpa [#allocation4], 0
    %19 = vsyncpa [#allocation12], 0
    // Predicated region
    $region2: #{tpu_custom_call.1} parent=1 // pred_check
      _
    $region3: #{tpu_custom_call.1} parent=1 // pred_check_branch
      %21 = sbr.rel (0) target = $region5
    $region4: #{tpu_custom_call.1} parent=1 // pred_region
      %s23 = ssub.s32 32, 32
      %24 = vsyncadd [#allocation3], %s23
      %s25 = sshll.u32 [#allocation2], 4
      %s26 = int_to_ptr.vmem [resolvable:$true] %s25
      %31 = dma.hbm_to_vmem [thread:$0]  %s0, 32, %s26, [#allocation3], 16, 16, 1
    $region5: #{tpu_custom_call.1} parent=1 // pred_fallthru
      _
    // Predicated region
    $region6: #{tpu_custom_call.1} parent=1 // pred_check
      _
    $region7: #{tpu_custom_call.1} parent=1 // pred_check_branch
      %33 = sbr.rel (0) target = $region9
    $region8: #{tpu_custom_call.1} parent=1 // pred_region
      %s35 = ssub.s32 64, 64
      %36 = vsyncadd [#allocation6], %s35
      %s37 = sshll.u32 [#allocation5], 4
      %s38 = int_to_ptr.vmem [resolvable:$true] %s37
      %43 = dma.hbm_to_vmem [thread:$0]  %s1, 64, %s38, [#allocation6], 32, 32, 2
    $region9: #{tpu_custom_call.1} parent=1 // pred_fallthru
      _
    // Predicated region
    $region10: #{tpu_custom_call.1} parent=1 // pred_check
      _
    $region11: #{tpu_custom_call.1} parent=1 // pred_check_branch
      %45 = sbr.rel (0) target = $region13
    $region12: #{tpu_custom_call.1} parent=1 // pred_region
      %s47 = ssub.s32 32, 32
      %48 = vsyncadd [#allocation6], %s47
      %s49 = sshll.u32 [#allocation7], 4
      %s50 = int_to_ptr.vmem [resolvable:$true] %s49
      %55 = dma.hbm_to_vmem [thread:$0]  %s2, 32, %s50, [#allocation6], 16, 16, 1
    $region13: #{tpu_custom_call.1} parent=1 // pred_fallthru
      _
    // Predicated region
    $region14: #{tpu_custom_call.1} parent=1 // pred_check
      _
    $region15: #{tpu_custom_call.1} parent=1 // pred_check_branch
      %57 = sbr.rel (0) target = $region17
    $region16: #{tpu_custom_call.1} parent=1 // pred_region
      _
    $region17: #{tpu_custom_call.1} parent=1 // pred_fallthru
      _
    // Predicated region
    $region18: #{tpu_custom_call.1} parent=1 // pred_check
      _
    $region19: #{tpu_custom_call.1} parent=1 // pred_check_branch
      %59 = sbr.rel (0) target = $region21
    $region20: #{tpu_custom_call.1} parent=1 // pred_region
      %s61 = ssub.s32 4096, 4096
      %62 = vsyncadd [#allocation9], %s61
      %s63 = sshll.u32 [#allocation8], 4
      %s64 = int_to_ptr.vmem [resolvable:$true] %s63
      %69 = dma.hbm_to_vmem [thread:$0]  %s4, 4096, %s64, [#allocation9], 128, 128, 8
    $region21: #{tpu_custom_call.1} parent=1 // pred_fallthru
      _
    // Predicated region
    $region22: #{tpu_custom_call.1} parent=1 // pred_check
      _
    $region23: #{tpu_custom_call.1} parent=1 // pred_check_branch
      %71 = sbr.rel (0) target = $region25
    $region24: #{tpu_custom_call.1} parent=1 // pred_region
      _
    $region25: #{tpu_custom_call.1} parent=1 // pred_fallthru
      _
    // Predicated region
    $region26: #{tpu_custom_call.1} parent=1 // pred_check
      _
    $region27: #{tpu_custom_call.1} parent=1 // pred_check_branch
      %73 = sbr.rel (0) target = $region29
    $region28: #{tpu_custom_call.1} parent=1 // pred_region
      _
    $region29: #{tpu_custom_call.1} parent=1 // pred_fallthru
      _
    // Predicated region
    $region30: #{tpu_custom_call.1} parent=1 // pred_check
      _
    $region31: #{tpu_custom_call.1} parent=1 // pred_check_branch
      %75 = sbr.rel (0) target = $region33
    $region32: #{tpu_custom_call.1} parent=1 // pred_region
      _
    $region33: #{tpu_custom_call.1} parent=1 // pred_fallthru
      _
    // Predicated region
    $region34: #{tpu_custom_call.1} parent=1 // pred_check
      _
    $region35: #{tpu_custom_call.1} parent=1 // pred_check_branch
      %77 = sbr.rel (0) target = $region37
    $region36: #{tpu_custom_call.1} parent=1 // pred_region
      %78 = dma.done [#allocation3], 32
    $region37: #{tpu_custom_call.1} parent=1 // pred_fallthru
      _
    // Predicated region
    $region38: #{tpu_custom_call.1} parent=1 // pred_check
      _
    $region39: #{tpu_custom_call.1} parent=1 // pred_check_branch
      %80 = sbr.rel (0) target = $region41
    $region40: #{tpu_custom_call.1} parent=1 // pred_region
      %81 = dma.done [#allocation6], 64
    $region41: #{tpu_custom_call.1} parent=1 // pred_fallthru
      _
    // Predicated region
    $region42: #{tpu_custom_call.1} parent=1 // pred_check
      _
    $region43: #{tpu_custom_call.1} parent=1 // pred_check_branch
      %83 = sbr.rel (0) target = $region45
    $region44: #{tpu_custom_call.1} parent=1 // pred_region
      %84 = dma.done [#allocation6], 32
    $region45: #{tpu_custom_call.1} parent=1 // pred_fallthru
      _
    // Predicated region
    $region46: #{tpu_custom_call.1} parent=1 // pred_check
      _
    $region47: #{tpu_custom_call.1} parent=1 // pred_check_branch
      %86 = sbr.rel (0) target = $region49
    $region48: #{tpu_custom_call.1} parent=1 // pred_region
      %87 = dma.done [#allocation9], 4096
    $region49: #{tpu_custom_call.1} parent=1 // pred_fallthru
      _
    %v88 = vld [vmem:[#allocation2] sm:$0x1]
    %v89 = vld [vmem:[#allocation2 + $0x1] sm:$0x1]
    %v90 = vld [vmem:[%s5] sm:$0xff]
    %v91 = vld [vmem:[%s5 + $0x8] sm:$0xff]
    %v92 = vld [vmem:[%s5 + $0x10] sm:$0xff]
    %v93 = vld [vmem:[%s5 + $0x18] sm:$0xff]
    %v96 = vcombine.low %v88, %v89
    %v98 = vunpack.c.l.s4 1966171168
    %v99 = vunpack.c.0.s8 %v98
    %v100 = vlaneseq
    %v101 = vshrl.u32 %v100, 7
    %v102 = vsub.s32 %v99, %v101
    %v103 = vrot.slane %v96, %v102
    %v105 = vunpack.c.l.s4 1966171168
    %v106 = vunpack.c.0.s8 %v105
    %v107 = vlaneseq
    %v108 = vshrl.u32 %v107, 7
    %v109 = vsub.s32 %v106, %v108
    %v110 = vrot.slane %v103, %v109
    %vm111 = vcmask 130048
    %v113 = vsel %vm111, %v90, 0
    %v116 = vsel %vm111, %v91, 0
    %v119 = vsel %vm111, %v92, 0
    %v122 = vsel %vm111, %v93, 0
    %v124 = vsel %vm111, %v110, 0
    %126 = vmatprep.subr.mxu0 0.0
    %127 = vmatpush1.xpose.msra.mxu0 %v124
    %128 = vmatprep.subr.mxu0 0.0
    %129 = vmatpush1.xpose.msra.mxu0 0.0
    %130 = vmatprep.subr.mxu0 0.0
    %131 = vmatpush1.xpose.msra.mxu0 0.0
    %132 = vmatprep.subr.mxu0 0.0
    %133 = vmatpush1.xpose.msra.mxu0 0.0
    %134 = vmatprep.subr.mxu0 0.0
    %135 = vmatpush1.xpose.msra.mxu0 0.0
    %136 = vmatprep.subr.mxu0 0.0
    %137 = vmatpush1.xpose.msra.mxu0 0.0
    %138 = vmatprep.subr.mxu0 0.0
    %139 = vmatpush1.xpose.msra.mxu0 0.0
    %140 = vmatprep.subr.mxu0 0.0
    %141 = vmatpush1.xpose.msra.mxu0 0.0
    %142 = vmatprep.subr.mxu0 0.0
    %143 = vmatpush1.xpose.msra.mxu0 0.0
    %144 = vmatprep.subr.mxu0 0.0
    %145 = vmatpush1.xpose.msra.mxu0 0.0
    %146 = vmatprep.subr.mxu0 0.0
    %147 = vmatpush1.xpose.msra.mxu0 0.0
    %148 = vmatprep.subr.mxu0 0.0
    %149 = vmatpush1.xpose.msra.mxu0 0.0
    %150 = vmatprep.subr.mxu0 0.0
    %151 = vmatpush1.xpose.msra.mxu0 0.0
    %152 = vmatprep.subr.mxu0 0.0
    %153 = vmatpush1.xpose.msra.mxu0 0.0
    %154 = vmatprep.subr.mxu0 0.0
    %155 = vmatpush1.xpose.msra.mxu0 0.0
    %156 = vmatprep.subr.mxu0 0.0
    %157 = vmatpush1.xpose.msra.mxu0 0.0
    %158 = vmatprep.subr.mxu0 0.0
    %159 = vmatpush1.xpose.msra.mxu0 0.0
    %160 = vmatprep.subr.mxu0 0.0
    %161 = vmatpush1.xpose.msra.mxu0 0.0
    %162 = vmatprep.subr.mxu0 0.0
    %163 = vmatpush1.xpose.msra.mxu0 0.0
    %164 = vmatprep.subr.mxu0 0.0
    %165 = vmatpush1.xpose.msra.mxu0 0.0
    %166 = vmatprep.subr.mxu0 0.0
    %167 = vmatpush1.xpose.msra.mxu0 0.0
    %168 = vmatprep.subr.mxu0 0.0
    %169 = vmatpush1.xpose.msra.mxu0 0.0
    %170 = vmatprep.subr.mxu0 0.0
    %171 = vmatpush1.xpose.msra.mxu0 0.0
    %172 = vmatprep.subr.mxu0 0.0
    %173 = vmatpush1.xpose.msra.mxu0 0.0
    %174 = vmatprep.subr.mxu0 0.0
    %175 = vmatpush1.xpose.msra.mxu0 0.0
    %176 = vmatprep.subr.mxu0 0.0
    %177 = vmatpush1.xpose.msra.mxu0 0.0
    %178 = vmatprep.subr.mxu0 0.0
    %179 = vmatpush1.xpose.msra.mxu0 0.0
    %180 = vmatprep.subr.mxu0 0.0
    %181 = vmatpush1.xpose.msra.mxu0 0.0
    %182 = vmatprep.subr.mxu0 0.0
    %183 = vmatpush1.xpose.msra.mxu0 0.0
    %184 = vmatprep.subr.mxu0 0.0
    %185 = vmatpush1.xpose.msra.mxu0 0.0
    %186 = vmatprep.subr.mxu0 0.0
    %187 = vmatpush1.xpose.msra.mxu0 0.0
    %188 = vmatprep.subr.mxu0 0.0
    %189 = vmatpush1.xpose.msra.mxu0 0.0
    %190 = vmatprep.mubr.f32.mxu0 0.0
    %191 = vmatmul.mubr.f32.gmra.mrb[0].mxu0 %v113
    %v192 = vpop.f32.mrb[0].mxu0
    %v193 = vadd.f32 0.0, %v192
    %v194 = vpop.f32.mrb[0].mxu0
    %195 = vmatprep.mubr.f32.mxu0 0.0
    %196 = vmatmul.mubr.f32.gmra.mrb[0].mxu0 %v116
    %v197 = vpop.f32.mrb[0].mxu0
    %v198 = vadd.f32 0.0, %v197
    %v199 = vpop.f32.mrb[0].mxu0
    %200 = vmatprep.mubr.f32.mxu0 0.0
    %201 = vmatmul.mubr.f32.gmra.mrb[0].mxu0 %v119
    %v202 = vpop.f32.mrb[0].mxu0
    %v203 = vadd.f32 0.0, %v202
    %v204 = vpop.f32.mrb[0].mxu0
    %205 = vmatprep.mubr.f32.mxu0 0.0
    %206 = vmatmul.mubr.f32.gmra.mrb[0].mxu0 %v122
    %v207 = vpop.f32.mrb[0].mxu0
    %v208 = vadd.f32 0.0, %v207
    %v209 = vpop.f32.mrb[0].mxu0
    %210 = vdwg.mxu0
    %v211 = vld [vmem:[#allocation5] sm:$0x3]
    %v212 = vld [vmem:[#allocation5 + $0x2] sm:$0x3]
    %v213 = vld [vmem:[#allocation7] sm:$0x1]
    %v214 = vld [vmem:[#allocation7 + $0x1] sm:$0x1]
    %v217 = vrot.slane %v212, 7
    %vm218 = vcmask 1041409
    %v219 = vsel %vm218, %v217, %v211
    %221 = vrot.lane.b32.xlu0 %v219, 113
    %v222 = vpop.permute.xlu0 %221
    %v223 = vrot.slane %v211, 1
    %v224 = vsel %vm218, %v212, %v223
    %226 = vrot.lane.b32.xlu0 %v224, 81
    %v227 = vpop.permute.xlu0 %226
    %v228 = vld [vmem:[%s7] sm:$0xff]
    %v229 = vld [vmem:[%s7 + $0x8] sm:$0xff]
    %v230 = vld [vmem:[%s7 + $0x10] sm:$0xff]
    %v231 = vld [vmem:[%s7 + $0x18] sm:$0xff]
    %v232 = vld [vmem:[%s6] sm:$0xff]
    %v233 = vld [vmem:[%s6 + $0x8] sm:$0xff]
    %v234 = vld [vmem:[%s6 + $0x10] sm:$0xff]
    %v235 = vld [vmem:[%s6 + $0x18] sm:$0xff]
    %v236 = vlaneseq
    %v237 = vshrl.u32 %v236, 7
    %v238 = vsub.s32 0, %v237
    %v239 = vrot.slane %v222, %v238
    %v240 = vlaneseq
    %v241 = vshrl.u32 %v240, 7
    %v242 = vsub.s32 0, %v241
    %v243 = vrot.slane %v227, %v242
    %245 = vrot.lane.b32.xlu0 %v239, 256
    %v246 = vpop.permute.xlu0 %245
    %s248 = sor.u32 256, 8
    %249 = vrot.lane.b32.xlu0 %v239, %s248
    %v250 = vpop.permute.xlu0 %249
    %s252 = sor.u32 256, 16
    %253 = vrot.lane.b32.xlu0 %v239, %s252
    %v254 = vpop.permute.xlu0 %253
    %s256 = sor.u32 256, 24
    %257 = vrot.lane.b32.xlu0 %v239, %s256
    %v258 = vpop.permute.xlu0 %257
    %s260 = sor.u32 256, 32
    %261 = vrot.lane.b32.xlu0 %v243, %s260
    %v262 = vpop.permute.xlu0 %261
    %s264 = sor.u32 256, 40
    %265 = vrot.lane.b32.xlu0 %v243, %s264
    %v266 = vpop.permute.xlu0 %265
    %s268 = sor.u32 256, 48
    %269 = vrot.lane.b32.xlu0 %v243, %s268
    %v270 = vpop.permute.xlu0 %269
    %s272 = sor.u32 256, 56
    %273 = vrot.lane.b32.xlu0 %v243, %s272
    %v274 = vpop.permute.xlu0 %273
    %vm275 = vcmask 523264
    %v277 = vsel %vm275, %v232, 0
    %v280 = vsel %vm275, %v233, 0
    %v283 = vsel %vm275, %v234, 0
    %v286 = vsel %vm275, %v235, 0
    %288 = vmatprep.subr.mxu0 0.0
    %289 = vmatpush1.msra.mxu0 %v246
    %290 = vmatprep.subr.mxu0 0.0
    %291 = vmatpush1.msra.mxu0 %v250
    %292 = vmatprep.subr.mxu0 0.0
    %293 = vmatpush1.msra.mxu0 %v254
    %294 = vmatprep.subr.mxu0 0.0
    %295 = vmatpush1.msra.mxu0 %v258
    %296 = vmatprep.subr.mxu0 0.0
    %297 = vmatpush1.msra.mxu0 %v262
    %298 = vmatprep.subr.mxu0 0.0
    %299 = vmatpush1.msra.mxu0 %v266
    %300 = vmatprep.subr.mxu0 0.0
    %301 = vmatpush1.msra.mxu0 %v270
    %302 = vmatprep.subr.mxu0 0.0
    %303 = vmatpush1.msra.mxu0 %v274
    %304 = vmatprep.subr.mxu0 0.0
    %305 = vmatpush1.msra.mxu0 0.0
    %306 = vmatprep.subr.mxu0 0.0
    %307 = vmatpush1.msra.mxu0 0.0
    %308 = vmatprep.subr.mxu0 0.0
    %309 = vmatpush1.msra.mxu0 0.0
    %310 = vmatprep.subr.mxu0 0.0
    %311 = vmatpush1.msra.mxu0 0.0
    %312 = vmatprep.subr.mxu0 0.0
    %313 = vmatpush1.msra.mxu0 0.0
    %314 = vmatprep.subr.mxu0 0.0
    %315 = vmatpush1.msra.mxu0 0.0
    %316 = vmatprep.subr.mxu0 0.0
    %317 = vmatpush1.msra.mxu0 0.0
    %318 = vmatprep.subr.mxu0 0.0
    %319 = vmatpush1.msra.mxu0 0.0
    %320 = vmatprep.subr.mxu0 0.0
    %321 = vmatpush1.msra.mxu0 0.0
    %322 = vmatprep.subr.mxu0 0.0
    %323 = vmatpush1.msra.mxu0 0.0
    %324 = vmatprep.subr.mxu0 0.0
    %325 = vmatpush1.msra.mxu0 0.0
    %326 = vmatprep.subr.mxu0 0.0
    %327 = vmatpush1.msra.mxu0 0.0
    %328 = vmatprep.subr.mxu0 0.0
    %329 = vmatpush1.msra.mxu0 0.0
    %330 = vmatprep.subr.mxu0 0.0
    %331 = vmatpush1.msra.mxu0 0.0
    %332 = vmatprep.subr.mxu0 0.0
    %333 = vmatpush1.msra.mxu0 0.0
    %334 = vmatprep.subr.mxu0 0.0
    %335 = vmatpush1.msra.mxu0 0.0
    %336 = vmatprep.subr.mxu0 0.0
    %337 = vmatpush1.msra.mxu0 0.0
    %338 = vmatprep.subr.mxu0 0.0
    %339 = vmatpush1.msra.mxu0 0.0
    %340 = vmatprep.subr.mxu0 0.0
    %341 = vmatpush1.msra.mxu0 0.0
    %342 = vmatprep.subr.mxu0 0.0
    %343 = vmatpush1.msra.mxu0 0.0
    %344 = vmatprep.subr.mxu0 0.0
    %345 = vmatpush1.msra.mxu0 0.0
    %346 = vmatprep.subr.mxu0 0.0
    %347 = vmatpush1.msra.mxu0 0.0
    %348 = vmatprep.subr.mxu0 0.0
    %349 = vmatpush1.msra.mxu0 0.0
    %350 = vmatprep.subr.mxu0 0.0
    %351 = vmatpush1.msra.mxu0 0.0
    %352 = vmatprep.mubr.f32.mxu0 0.0
    %353 = vmatmul.mubr.f32.gmra.mrb[0].mxu0 %v277
    %v354 = vpop.f32.mrb[0].mxu0
    %v355 = vadd.f32 0.0, %v354
    %v356 = vpop.f32.mrb[0].mxu0
    %357 = vmatprep.mubr.f32.mxu0 0.0
    %358 = vmatmul.mubr.f32.gmra.mrb[0].mxu0 %v280
    %v359 = vpop.f32.mrb[0].mxu0
    %v360 = vadd.f32 0.0, %v359
    %v361 = vpop.f32.mrb[0].mxu0
    %362 = vmatprep.mubr.f32.mxu0 0.0
    %363 = vmatmul.mubr.f32.gmra.mrb[0].mxu0 %v283
    %v364 = vpop.f32.mrb[0].mxu0
    %v365 = vadd.f32 0.0, %v364
    %v366 = vpop.f32.mrb[0].mxu0
    %367 = vmatprep.mubr.f32.mxu0 0.0
    %368 = vmatmul.mubr.f32.gmra.mrb[0].mxu0 %v286
    %v369 = vpop.f32.mrb[0].mxu0
    %v370 = vadd.f32 0.0, %v369
    %v371 = vpop.f32.mrb[0].mxu0
    %372 = vdwg.mxu0
    %v373 = vld [vmem:[%s3] sm:$0xff]
    %v374 = vld [vmem:[%s3 + $0x8] sm:$0xff]
    %v375 = vld [vmem:[%s3 + $0x10] sm:$0xff]
    %v376 = vld [vmem:[%s3 + $0x18] sm:$0xff]
    %378 = vset.pattern.permute.xlu0 0
    %379 = vperm.xlu0 %378, %v193
    %v380 = vpop.permute.xlu0 %379
    %383 = vset.pattern.permute.xlu0 0
    %384 = vperm.xlu0 %383, %v198
    %v385 = vpop.permute.xlu0 %384
    %388 = vset.pattern.permute.xlu0 0
    %389 = vperm.xlu0 %388, %v203
    %v390 = vpop.permute.xlu0 %389
    %393 = vset.pattern.permute.xlu0 0
    %394 = vperm.xlu0 %393, %v208
    %v395 = vpop.permute.xlu0 %394
    %v397 = vadd.f32 %v380, %v373
    %v398 = vadd.f32 %v385, %v374
    %v399 = vadd.f32 %v390, %v375
    %v400 = vadd.f32 %v395, %v376
    %v401 = vadd.f32 %v397, %v355
    %v402 = vadd.f32 %v398, %v360
    %v403 = vadd.f32 %v399, %v365
    %v404 = vadd.f32 %v400, %v370
    %v405 = vtanh.pop %v401
    %v406 = vtanh.pop %v402
    %v407 = vtanh.pop %v403
    %v408 = vtanh.pop %v404
    %410 = vset.pattern.permute.xlu0 0
    %411 = vperm.xlu0 %410, %v228
    %v412 = vpop.permute.xlu0 %411
    %415 = vset.pattern.permute.xlu0 0
    %416 = vperm.xlu0 %415, %v229
    %v417 = vpop.permute.xlu0 %416
    %420 = vset.pattern.permute.xlu0 0
    %421 = vperm.xlu0 %420, %v230
    %v422 = vpop.permute.xlu0 %421
    %425 = vset.pattern.permute.xlu0 0
    %426 = vperm.xlu0 %425, %v231
    %v427 = vpop.permute.xlu0 %426
    %v429 = vmul.f32 %v405, %v412
    %v430 = vmul.f32 %v406, %v417
    %v431 = vmul.f32 %v407, %v422
    %v432 = vmul.f32 %v408, %v427
    %v433 = vadd.f32 %v429, %v430
    %v434 = vadd.f32 %v433, %v431
    %v435 = vadd.f32 %v434, %v432
    %v436 = vrot.slane %v435, 4
    %v437 = vadd.f32 %v435, %v436
    %v438 = vrot.slane %v437, 2
    %v439 = vadd.f32 %v437, %v438
    %v440 = vrot.slane %v439, 1
    %v441 = vadd.f32 %v439, %v440
    %v442 = vadd.f32 %v441, %v213
    %vm443 = vcmask 1040384
    %v444 = vsel %vm443, %v442, -inf
    %445 = vmax.xlane.f32.xlu0 %v444
    %v446 = vpop.xlane.xlu0 %445
    %v447 = vsub.f32 %v442, %v446
    %v448 = vmul.f32 %v447, 1.442695
    %v449 = vpow.pop %v448
    %v450 = vsel %vm443, %v449, 0.0
    %451 = vadd.xlane.f32.xlu0 %v450
    %v452 = vpop.xlane.xlu0 %451
    %v453 = vrcp.pop %v452
    %v454 = vmul.f32 %v452, %v453
    %v455 = vsub.f32 2.0, %v454
    %v456 = vmul.f32 %v453, %v455
    %v457 = vmul.f32 %v449, %v456
    %v458 = vld [vmem:[#allocation8] sm:$0xff]
    %v459 = vld [vmem:[#allocation8 + $0x8] sm:$0xff]
    %v460 = vld [vmem:[#allocation8 + $0x10] sm:$0xff]
    %v461 = vld [vmem:[#allocation8 + $0x18] sm:$0xff]
    %v462 = vld [vmem:[#allocation8 + $0x20] sm:$0xff]
    %v463 = vld [vmem:[#allocation8 + $0x28] sm:$0xff]
    %v464 = vld [vmem:[#allocation8 + $0x30] sm:$0xff]
    %v465 = vld [vmem:[#allocation8 + $0x38] sm:$0xff]
    %v466 = vld [vmem:[#allocation8 + $0x40] sm:$0xff]
    %v467 = vld [vmem:[#allocation8 + $0x48] sm:$0xff]
    %v468 = vld [vmem:[#allocation8 + $0x50] sm:$0xff]
    %v469 = vld [vmem:[#allocation8 + $0x58] sm:$0xff]
    %v470 = vld [vmem:[#allocation8 + $0x60] sm:$0xff]
    %v471 = vld [vmem:[#allocation8 + $0x68] sm:$0xff]
    %v472 = vld [vmem:[#allocation8 + $0x70] sm:$0xff]
    %v473 = vld [vmem:[#allocation8 + $0x78] sm:$0xff]
    %474 = vmatprep.subr.mxu0 0.0
    %475 = vmatpush1.msra.mxu0 %v458
    %476 = vmatprep.subr.mxu0 0.0
    %477 = vmatpush1.msra.mxu0 %v459
    %478 = vmatprep.subr.mxu0 0.0
    %479 = vmatpush1.msra.mxu0 %v460
    %480 = vmatprep.subr.mxu0 0.0
    %481 = vmatpush1.msra.mxu0 %v461
    %482 = vmatprep.subr.mxu0 0.0
    %483 = vmatpush1.msra.mxu0 %v462
    %484 = vmatprep.subr.mxu0 0.0
    %485 = vmatpush1.msra.mxu0 %v463
    %486 = vmatprep.subr.mxu0 0.0
    %487 = vmatpush1.msra.mxu0 %v464
    %488 = vmatprep.subr.mxu0 0.0
    %489 = vmatpush1.msra.mxu0 %v465
    %490 = vmatprep.subr.mxu0 0.0
    %491 = vmatpush1.msra.mxu0 %v466
    %492 = vmatprep.subr.mxu0 0.0
    %493 = vmatpush1.msra.mxu0 %v467
    %494 = vmatprep.subr.mxu0 0.0
    %495 = vmatpush1.msra.mxu0 %v468
    %496 = vmatprep.subr.mxu0 0.0
    %497 = vmatpush1.msra.mxu0 %v469
    %498 = vmatprep.subr.mxu0 0.0
    %499 = vmatpush1.msra.mxu0 %v470
    %500 = vmatprep.subr.mxu0 0.0
    %501 = vmatpush1.msra.mxu0 %v471
    %502 = vmatprep.subr.mxu0 0.0
    %503 = vmatpush1.msra.mxu0 %v472
    %504 = vmatprep.subr.mxu0 0.0
    %505 = vmatpush1.msra.mxu0 %v473
    %506 = vmatprep.subr.mxu0 0.0
    %507 = vmatpush1.msra.mxu0 0.0
    %508 = vmatprep.subr.mxu0 0.0
    %509 = vmatpush1.msra.mxu0 0.0
    %510 = vmatprep.subr.mxu0 0.0
    %511 = vmatpush1.msra.mxu0 0.0
    %512 = vmatprep.subr.mxu0 0.0
    %513 = vmatpush1.msra.mxu0 0.0
    %514 = vmatprep.subr.mxu0 0.0
    %515 = vmatpush1.msra.mxu0 0.0
    %516 = vmatprep.subr.mxu0 0.0
    %517 = vmatpush1.msra.mxu0 0.0
    %518 = vmatprep.subr.mxu0 0.0
    %519 = vmatpush1.msra.mxu0 0.0
    %520 = vmatprep.subr.mxu0 0.0
    %521 = vmatpush1.msra.mxu0 0.0
    %522 = vmatprep.subr.mxu0 0.0
    %523 = vmatpush1.msra.mxu0 0.0
    %524 = vmatprep.subr.mxu0 0.0
    %525 = vmatpush1.msra.mxu0 0.0
    %526 = vmatprep.subr.mxu0 0.0
    %527 = vmatpush1.msra.mxu0 0.0
    %528 = vmatprep.subr.mxu0 0.0
    %529 = vmatpush1.msra.mxu0 0.0
    %530 = vmatprep.subr.mxu0 0.0
    %531 = vmatpush1.msra.mxu0 0.0
    %532 = vmatprep.subr.mxu0 0.0
    %533 = vmatpush1.msra.mxu0 0.0
    %534 = vmatprep.subr.mxu0 0.0
    %535 = vmatpush1.msra.mxu0 0.0
    %536 = vmatprep.subr.mxu0 0.0
    %537 = vmatpush1.msra.mxu0 0.0
    %538 = vmatprep.mubr.f32.mxu0 0.0
    %539 = vmatmul.mubr.f32.gmra.mrb[0].mxu0 %v457
    %v540 = vpop.f32.mrb[0].mxu0
    %v541 = vadd.f32 0.0, %v540
    %v542 = vpop.f32.mrb[0].mxu0
    %543 = vdwg.mxu0
    %544 = vst [vmem:[#allocation10] sm:$0x1] %v541
    %v546 = vrot.slane %v457, 7
    %v548 = vadd.f32 %v211, %v546
    %v549 = vsel %vm443, %v457, %v548
    %550 = vst [vmem:[#allocation11] sm:$0x3] %v549
    %v551 = vlaneseq
    %v552 = vshrl.u32 %v551, 7
    %v553 = vsub.s32 1, %v552
    %v554 = vrot.slane %v222, %v553
    %v555 = vlaneseq
    %v556 = vshrl.u32 %v555, 7
    %v557 = vsub.s32 1, %v556
    %v558 = vrot.slane %v227, %v557
    %560 = vrot.lane.b32.xlu0 %v554, 256
    %v561 = vpop.permute.xlu0 %560
    %s563 = sor.u32 256, 8
    %564 = vrot.lane.b32.xlu0 %v554, %s563
    %v565 = vpop.permute.xlu0 %564
    %s567 = sor.u32 256, 16
    %568 = vrot.lane.b32.xlu0 %v554, %s567
    %v569 = vpop.permute.xlu0 %568
    %s571 = sor.u32 256, 24
    %572 = vrot.lane.b32.xlu0 %v554, %s571
    %v573 = vpop.permute.xlu0 %572
    %s575 = sor.u32 256, 32
    %576 = vrot.lane.b32.xlu0 %v558, %s575
    %v577 = vpop.permute.xlu0 %576
    %s579 = sor.u32 256, 40
    %580 = vrot.lane.b32.xlu0 %v558, %s579
    %v581 = vpop.permute.xlu0 %580
    %s583 = sor.u32 256, 48
    %584 = vrot.lane.b32.xlu0 %v558, %s583
    %v585 = vpop.permute.xlu0 %584
    %s587 = sor.u32 256, 56
    %588 = vrot.lane.b32.xlu0 %v558, %s587
    %v589 = vpop.permute.xlu0 %588
    %590 = vmatprep.subr.mxu0 0.0
    %591 = vmatpush1.msra.mxu0 %v561
    %592 = vmatprep.subr.mxu0 0.0
    %593 = vmatpush1.msra.mxu0 %v565
    %594 = vmatprep.subr.mxu0 0.0
    %595 = vmatpush1.msra.mxu0 %v569
    %596 = vmatprep.subr.mxu0 0.0
    %597 = vmatpush1.msra.mxu0 %v573
    %598 = vmatprep.subr.mxu0 0.0
    %599 = vmatpush1.msra.mxu0 %v577
    %600 = vmatprep.subr.mxu0 0.0
    %601 = vmatpush1.msra.mxu0 %v581
    %602 = vmatprep.subr.mxu0 0.0
    %603 = vmatpush1.msra.mxu0 %v585
    %604 = vmatprep.subr.mxu0 0.0
    %605 = vmatpush1.msra.mxu0 %v589
    %606 = vmatprep.subr.mxu0 0.0
    %607 = vmatpush1.msra.mxu0 0.0
    %608 = vmatprep.subr.mxu0 0.0
    %609 = vmatpush1.msra.mxu0 0.0
    %610 = vmatprep.subr.mxu0 0.0
    %611 = vmatpush1.msra.mxu0 0.0
    %612 = vmatprep.subr.mxu0 0.0
    %613 = vmatpush1.msra.mxu0 0.0
    %614 = vmatprep.subr.mxu0 0.0
    %615 = vmatpush1.msra.mxu0 0.0
    %616 = vmatprep.subr.mxu0 0.0
    %617 = vmatpush1.msra.mxu0 0.0
    %618 = vmatprep.subr.mxu0 0.0
    %619 = vmatpush1.msra.mxu0 0.0
    %620 = vmatprep.subr.mxu0 0.0
    %621 = vmatpush1.msra.mxu0 0.0
    %622 = vmatprep.subr.mxu0 0.0
    %623 = vmatpush1.msra.mxu0 0.0
    %624 = vmatprep.subr.mxu0 0.0
    %625 = vmatpush1.msra.mxu0 0.0
    %626 = vmatprep.subr.mxu0 0.0
    %627 = vmatpush1.msra.mxu0 0.0
    %628 = vmatprep.subr.mxu0 0.0
    %629 = vmatpush1.msra.mxu0 0.0
    %630 = vmatprep.subr.mxu0 0.0
    %631 = vmatpush1.msra.mxu0 0.0
    %632 = vmatprep.subr.mxu0 0.0
    %633 = vmatpush1.msra.mxu0 0.0
    %634 = vmatprep.subr.mxu0 0.0
    %635 = vmatpush1.msra.mxu0 0.0
    %636 = vmatprep.subr.mxu0 0.0
    %637 = vmatpush1.msra.mxu0 0.0
    %638 = vmatprep.subr.mxu0 0.0
    %639 = vmatpush1.msra.mxu0 0.0
    %640 = vmatprep.subr.mxu0 0.0
    %641 = vmatpush1.msra.mxu0 0.0
    %642 = vmatprep.subr.mxu0 0.0
    %643 = vmatpush1.msra.mxu0 0.0
    %644 = vmatprep.subr.mxu0 0.0
    %645 = vmatpush1.msra.mxu0 0.0
    %646 = vmatprep.subr.mxu0 0.0
    %647 = vmatpush1.msra.mxu0 0.0
    %648 = vmatprep.subr.mxu0 0.0
    %649 = vmatpush1.msra.mxu0 0.0
    %650 = vmatprep.subr.mxu0 0.0
    %651 = vmatpush1.msra.mxu0 0.0
    %652 = vmatprep.subr.mxu0 0.0
    %653 = vmatpush1.msra.mxu0 0.0
    %654 = vmatprep.mubr.f32.mxu0 0.0
    %655 = vmatmul.mubr.f32.gmra.mrb[0].mxu0 %v277
    %v656 = vpop.f32.mrb[0].mxu0
    %v657 = vadd.f32 0.0, %v656
    %v658 = vpop.f32.mrb[0].mxu0
    %659 = vmatprep.mubr.f32.mxu0 0.0
    %660 = vmatmul.mubr.f32.gmra.mrb[0].mxu0 %v280
    %v661 = vpop.f32.mrb[0].mxu0
    %v662 = vadd.f32 0.0, %v661
    %v663 = vpop.f32.mrb[0].mxu0
    %664 = vmatprep.mubr.f32.mxu0 0.0
    %665 = vmatmul.mubr.f32.gmra.mrb[0].mxu0 %v283
    %v666 = vpop.f32.mrb[0].mxu0
    %v667 = vadd.f32 0.0, %v666
    %v668 = vpop.f32.mrb[0].mxu0
    %669 = vmatprep.mubr.f32.mxu0 0.0
    %670 = vmatmul.mubr.f32.gmra.mrb[0].mxu0 %v286
    %v671 = vpop.f32.mrb[0].mxu0
    %v672 = vadd.f32 0.0, %v671
    %v673 = vpop.f32.mrb[0].mxu0
    %674 = vdwg.mxu0
    %s675 = scalar_lea.vmem %s3, 32
    %v676 = vld [vmem:[%s675] sm:$0xff]
    %v677 = vld [vmem:[%s675 + $0x8] sm:$0xff]
    %v678 = vld [vmem:[%s675 + $0x10] sm:$0xff]
    %v679 = vld [vmem:[%s675 + $0x18] sm:$0xff]
    %680 = vset.pattern.permute.xlu0 1
    %681 = vperm.xlu0 %680, %v193
    %v682 = vpop.permute.xlu0 %681
    %684 = vset.pattern.permute.xlu0 1
    %685 = vperm.xlu0 %684, %v198
    %v686 = vpop.permute.xlu0 %685
    %688 = vset.pattern.permute.xlu0 1
    %689 = vperm.xlu0 %688, %v203
    %v690 = vpop.permute.xlu0 %689
    %692 = vset.pattern.permute.xlu0 1
    %693 = vperm.xlu0 %692, %v208
    %v694 = vpop.permute.xlu0 %693
    %v696 = vadd.f32 %v682, %v676
    %v697 = vadd.f32 %v686, %v677
    %v698 = vadd.f32 %v690, %v678
    %v699 = vadd.f32 %v694, %v679
    %v700 = vadd.f32 %v696, %v657
    %v701 = vadd.f32 %v697, %v662
    %v702 = vadd.f32 %v698, %v667
    %v703 = vadd.f32 %v699, %v672
    %v704 = vtanh.pop %v700
    %v705 = vtanh.pop %v701
    %v706 = vtanh.pop %v702
    %v707 = vtanh.pop %v703
    %v708 = vmul.f32 %v704, %v412
    %v709 = vmul.f32 %v705, %v417
    %v710 = vmul.f32 %v706, %v422
    %v711 = vmul.f32 %v707, %v427
    %v712 = vadd.f32 %v708, %v709
    %v713 = vadd.f32 %v712, %v710
    %v714 = vadd.f32 %v713, %v711
    %v715 = vrot.slane %v714, 4
    %v716 = vadd.f32 %v714, %v715
    %v717 = vrot.slane %v716, 2
    %v718 = vadd.f32 %v716, %v717
    %v719 = vrot.slane %v718, 1
    %v720 = vadd.f32 %v718, %v719
    %v721 = vadd.f32 %v720, %v214
    %v722 = vsel %vm443, %v721, -inf
    %723 = vmax.xlane.f32.xlu0 %v722
    %v724 = vpop.xlane.xlu0 %723
    %v725 = vsub.f32 %v721, %v724
    %v726 = vmul.f32 %v725, 1.442695
    %v727 = vpow.pop %v726
    %v728 = vsel %vm443, %v727, 0.0
    %729 = vadd.xlane.f32.xlu0 %v728
    %v730 = vpop.xlane.xlu0 %729
    %v731 = vrcp.pop %v730
    %v732 = vmul.f32 %v730, %v731
    %v733 = vsub.f32 2.0, %v732
    %v734 = vmul.f32 %v731, %v733
    %v735 = vmul.f32 %v727, %v734
    %s736 = scalar_lea.vmem [#allocation8], 128
    %v737 = vld [vmem:[%s736] sm:$0xff]
    %v738 = vld [vmem:[%s736 + $0x8] sm:$0xff]
    %v739 = vld [vmem:[%s736 + $0x10] sm:$0xff]
    %v740 = vld [vmem:[%s736 + $0x18] sm:$0xff]
    %v741 = vld [vmem:[%s736 + $0x20] sm:$0xff]
    %v742 = vld [vmem:[%s736 + $0x28] sm:$0xff]
    %v743 = vld [vmem:[%s736 + $0x30] sm:$0xff]
    %v744 = vld [vmem:[%s736 + $0x38] sm:$0xff]
    %v745 = vld [vmem:[%s736 + $0x40] sm:$0xff]
    %v746 = vld [vmem:[%s736 + $0x48] sm:$0xff]
    %v747 = vld [vmem:[%s736 + $0x50] sm:$0xff]
    %v748 = vld [vmem:[%s736 + $0x58] sm:$0xff]
    %v749 = vld [vmem:[%s736 + $0x60] sm:$0xff]
    %v750 = vld [vmem:[%s736 + $0x68] sm:$0xff]
    %v751 = vld [vmem:[%s736 + $0x70] sm:$0xff]
    %v752 = vld [vmem:[%s736 + $0x78] sm:$0xff]
    %753 = vmatprep.subr.mxu0 0.0
    %754 = vmatpush1.msra.mxu0 %v737
    %755 = vmatprep.subr.mxu0 0.0
    %756 = vmatpush1.msra.mxu0 %v738
    %757 = vmatprep.subr.mxu0 0.0
    %758 = vmatpush1.msra.mxu0 %v739
    %759 = vmatprep.subr.mxu0 0.0
    %760 = vmatpush1.msra.mxu0 %v740
    %761 = vmatprep.subr.mxu0 0.0
    %762 = vmatpush1.msra.mxu0 %v741
    %763 = vmatprep.subr.mxu0 0.0
    %764 = vmatpush1.msra.mxu0 %v742
    %765 = vmatprep.subr.mxu0 0.0
    %766 = vmatpush1.msra.mxu0 %v743
    %767 = vmatprep.subr.mxu0 0.0
    %768 = vmatpush1.msra.mxu0 %v744
    %769 = vmatprep.subr.mxu0 0.0
    %770 = vmatpush1.msra.mxu0 %v745
    %771 = vmatprep.subr.mxu0 0.0
    %772 = vmatpush1.msra.mxu0 %v746
    %773 = vmatprep.subr.mxu0 0.0
    %774 = vmatpush1.msra.mxu0 %v747
    %775 = vmatprep.subr.mxu0 0.0
    %776 = vmatpush1.msra.mxu0 %v748
    %777 = vmatprep.subr.mxu0 0.0
    %778 = vmatpush1.msra.mxu0 %v749
    %779 = vmatprep.subr.mxu0 0.0
    %780 = vmatpush1.msra.mxu0 %v750
    %781 = vmatprep.subr.mxu0 0.0
    %782 = vmatpush1.msra.mxu0 %v751
    %783 = vmatprep.subr.mxu0 0.0
    %784 = vmatpush1.msra.mxu0 %v752
    %785 = vmatprep.subr.mxu0 0.0
    %786 = vmatpush1.msra.mxu0 0.0
    %787 = vmatprep.subr.mxu0 0.0
    %788 = vmatpush1.msra.mxu0 0.0
    %789 = vmatprep.subr.mxu0 0.0
    %790 = vmatpush1.msra.mxu0 0.0
    %791 = vmatprep.subr.mxu0 0.0
    %792 = vmatpush1.msra.mxu0 0.0
    %793 = vmatprep.subr.mxu0 0.0
    %794 = vmatpush1.msra.mxu0 0.0
    %795 = vmatprep.subr.mxu0 0.0
    %796 = vmatpush1.msra.mxu0 0.0
    %797 = vmatprep.subr.mxu0 0.0
    %798 = vmatpush1.msra.mxu0 0.0
    %799 = vmatprep.subr.mxu0 0.0
    %800 = vmatpush1.msra.mxu0 0.0
    %801 = vmatprep.subr.mxu0 0.0
    %802 = vmatpush1.msra.mxu0 0.0
    %803 = vmatprep.subr.mxu0 0.0
    %804 = vmatpush1.msra.mxu0 0.0
    %805 = vmatprep.subr.mxu0 0.0
    %806 = vmatpush1.msra.mxu0 0.0
    %807 = vmatprep.subr.mxu0 0.0
    %808 = vmatpush1.msra.mxu0 0.0
    %809 = vmatprep.subr.mxu0 0.0
    %810 = vmatpush1.msra.mxu0 0.0
    %811 = vmatprep.subr.mxu0 0.0
    %812 = vmatpush1.msra.mxu0 0.0
    %813 = vmatprep.subr.mxu0 0.0
    %814 = vmatpush1.msra.mxu0 0.0
    %815 = vmatprep.subr.mxu0 0.0
    %816 = vmatpush1.msra.mxu0 0.0
    %817 = vmatprep.mubr.f32.mxu0 0.0
    %818 = vmatmul.mubr.f32.gmra.mrb[0].mxu0 %v735
    %v819 = vpop.f32.mrb[0].mxu0
    %v820 = vadd.f32 0.0, %v819
    %v821 = vpop.f32.mrb[0].mxu0
    %822 = vdwg.mxu0
    %s823 = scalar_lea.vmem [#allocation10], 1
    %824 = vst [vmem:[%s823] sm:$0x1] %v820
    %v826 = vrot.slane %v735, 7
    %v828 = vadd.f32 %v212, %v826
    %v829 = vsel %vm443, %v735, %v828
    %s830 = scalar_lea.vmem [#allocation11], 2
    %831 = vst [vmem:[%s830] sm:$0x3] %v829
    // Predicated region
    $region50: #{tpu_custom_call.1} parent=1 // pred_check
      _
    $region51: #{tpu_custom_call.1} parent=1 // pred_check_branch
      %833 = sbr.rel (0) target = $region53
    $region52: #{tpu_custom_call.1} parent=1 // pred_region
      %s835 = ssub.s32 32, 32
      %836 = vsyncadd [#allocation4], %s835
      %s837 = sshll.u32 [#allocation10], 4
      %s838 = int_to_ptr.vmem [resolvable:$true] %s837
      %843 = dma.vmem_to_hbm [thread:$0]  %s838, 32, %s8, [#allocation4], 16, 16, 1
    $region53: #{tpu_custom_call.1} parent=1 // pred_fallthru
      _
    // Predicated region
    $region54: #{tpu_custom_call.1} parent=1 // pred_check
      _
    $region55: #{tpu_custom_call.1} parent=1 // pred_check_branch
      %845 = sbr.rel (0) target = $region57
    $region56: #{tpu_custom_call.1} parent=1 // pred_region
      %s847 = ssub.s32 64, 64
      %848 = vsyncadd [#allocation12], %s847
      %s849 = sshll.u32 [#allocation11], 4
      %s850 = int_to_ptr.vmem [resolvable:$true] %s849
      %855 = dma.vmem_to_hbm [thread:$0]  %s850, 64, %s9, [#allocation12], 32, 32, 2
    $region57: #{tpu_custom_call.1} parent=1 // pred_fallthru
      _
    // Predicated region
    $region58: #{tpu_custom_call.1} parent=1 // pred_check
      _
    $region59: #{tpu_custom_call.1} parent=1 // pred_check_branch
      %857 = sbr.rel (0) target = $region61
    $region60: #{tpu_custom_call.1} parent=1 // pred_region
      %858 = dma.done [#allocation4], 32
    $region61: #{tpu_custom_call.1} parent=1 // pred_fallthru
      _
    // Predicated region
    $region62: #{tpu_custom_call.1} parent=1 // pred_check
      _
    $region63: #{tpu_custom_call.1} parent=1 // pred_check_branch
      %860 = sbr.rel (0) target = $region65
    $region64: #{tpu_custom_call.1} parent=1 // pred_region
      %861 = dma.done [#allocation12], 64
    $region65: #{tpu_custom_call.1} parent=1 // pred_fallthru
      _
    %862 = vsyncpa [#allocation3], 1
    %863 = vsyncpa [#allocation6], 1
    %864 = vsyncpa [#allocation9], 1
    %865 = vsyncpa [#allocation4], 1
    %866 = vsyncpa [#allocation12], 1

</llo_original>
